<compile_context>
chip_gen: v7x
topology: tpu7x:2x2x1
jax: 0.10.0
libtpu: 0.0.40
codegen_flags: <defaults>
</compile_context>

<pallas_src>
import jax
import jax.numpy as jnp
from jax.experimental import pallas as pl
from jax.experimental.pallas import tpu as pltpu


def _round_up(x: int, m: int) -> int:
    return ((x + m - 1) // m) * m


# --------------------------------------------------------------------------
# Decoder: per-edge inner product, lane-dense multiply-reduce over edges
# --------------------------------------------------------------------------
def _edge_dot_kernel(zi_ref, zj_ref, out_ref):
    """zi_ref / zj_ref : (D, TE) f32 gathered endpoint features (edges on lanes)
    out_ref          : (1, TE) f32 lane-dense per-edge logits
    """
    out_ref[...] = jnp.sum(zi_ref[...] * zj_ref[...], axis=0, keepdims=True)


def decoder_forward(z, edge_index, *, te: int = 1024):
    """z: (N, D) float, edge_index: (2, E) int -> (E,) f32 inner-product logits."""
    n, d = z.shape
    e = edge_index.shape[1]

    e128 = _round_up(e, 128)
    te = min(te, e128)
    if e128 >= 256:                         # keep >= 2 edge tiles (v7x: 2 TCs)
        te = min(te, _round_up(pl.cdiv(e128, 2), 128))
    e_pad = _round_up(e, te)

    # Endpoint gather hoisted to XLA; the kernel is a pure lane-dense
    # multiply-reduce.  Note: like jnp (unlike PyTorch), out-of-range node
    # indices are clamped rather than raising.
    zf = z.astype(jnp.float32)
    src = edge_index[0].astype(jnp.int32)
    dst = edge_index[1].astype(jnp.int32)
    zi_t = jnp.zeros((d, e_pad), jnp.float32).at[:, :e].set(
        jnp.take(zf, src, axis=0).T)
    zj_t = jnp.zeros((d, e_pad), jnp.float32).at[:, :e].set(
        jnp.take(zf, dst, axis=0).T)

    out = pl.pallas_call(
        _edge_dot_kernel,
        out_shape=jax.ShapeDtypeStruct((1, e_pad), jnp.float32),
        grid=(e_pad // te,),
        in_specs=[
            pl.BlockSpec((d, te), lambda i: (0, i)),
            pl.BlockSpec((d, te), lambda i: (0, i)),
        ],
        out_specs=pl.BlockSpec((1, te), lambda i: (0, i)),
        compiler_params=pltpu.CompilerParams(
            dimension_semantics=("parallel",)),
    )(zi_t, zj_t)
    return out[0, :e]                        # (E,)


# --------------------------------------------------------------------------
# VGAE reparameterization: z = loc + exp(scale) * eps  (Normal rsample)
# --------------------------------------------------------------------------
def _reparam_kernel(loc_ref, scale_ref, eps_ref, z_ref):
    z_ref[...] = loc_ref[...] + jnp.exp(scale_ref[...]) * eps_ref[...]


def reparameterize(loc, scale, eps, *, block_rows: int = 512):
    """z = loc + exp(scale) * eps, computed on a lane-dense (rows, 128) slab."""
    n, d = loc.shape
    total = n * d
    lane = 128
    rows = _round_up(pl.cdiv(total, lane), 8)
    br = min(block_rows, rows)               # block rows (multiple of 8)
    rows_pad = _round_up(rows, br)
    padded = rows_pad * lane

    def prep(x):
        flat = jnp.ravel(x.astype(jnp.float32))
        flat = jnp.pad(flat, (0, padded - total))
        return flat.reshape(rows_pad, lane)

    spec = pl.BlockSpec((br, lane), lambda i: (i, 0))
    z = pl.pallas_call(
        _reparam_kernel,
        out_shape=jax.ShapeDtypeStruct((rows_pad, lane), jnp.float32),
        grid=(rows_pad // br,),
        in_specs=[spec, spec, spec],
        out_specs=spec,
        compiler_params=pltpu.CompilerParams(
            dimension_semantics=("parallel",)),
    )(prep(loc), prep(scale), prep(eps))
    return jnp.ravel(z)[:total].reshape(n, d)


if __name__ == "__main__":
    key = jax.random.PRNGKey(0)
    k_loc, k_scale, k_eps, k_src, k_dst = jax.random.split(key, 5)

    # Small, deliberately non-multiple shapes to exercise the tiling/padding.
    N, D, E = 50, 16, 200                    # nodes, latent dim, edges
    loc = jax.random.normal(k_loc, (N, D), dtype=jnp.float32)
    log_scale = 0.1 * jax.random.normal(k_scale, (N, D), dtype=jnp.float32)
    eps = jax.random.normal(k_eps, (N, D), dtype=jnp.float32)
    src = jax.random.randint(k_src, (E,), 0, N, dtype=jnp.int32)
    dst = jax.random.randint(k_dst, (E,), 0, N, dtype=jnp.int32)
    edge_index = jnp.stack([src, dst], axis=0)   # (2, E), PyTorch convention

    # VGAE forward: z = Normal(loc, exp(scale)).rsample()
    z = reparameterize(loc, log_scale, eps)
    # Decoder forward: per-edge inner-product logits.
    logits = decoder_forward(z, edge_index)
    z, logits = jax.block_until_ready((z, logits))

    # Pure-JAX reference (same semantics as the PyTorch forward).
    z_ref = loc + jnp.exp(log_scale) * eps
    ref = jnp.sum(z_ref[edge_index[0]] * z_ref[edge_index[1]], axis=-1)

    assert z.shape == (N, D) and logits.shape == (E,)
    assert jnp.allclose(z, z_ref, atol=1e-5, rtol=1e-5)
    assert jnp.allclose(logits, ref, atol=1e-4, rtol=1e-4)

    print("KERNEL_OK")
</pallas_src>

<mosaic_0001>
module attributes {stable_mosaic.version = 11 : i64} {
  func.func @_reparam_kernel(%arg0: i32, %arg1: memref<8x128xf32, #tpu.memory_space<vmem>>, %arg2: memref<8x128xf32, #tpu.memory_space<vmem>>, %arg3: memref<8x128xf32, #tpu.memory_space<vmem>>, %arg4: memref<8x128xf32, #tpu.memory_space<vmem>>) attributes {dimension_semantics = [#tpu.dimension_semantics<parallel>], iteration_bounds = array<i64: 1>, scalar_prefetch = 0 : i64, scratch_operands = 0 : i64, tpu.core_type = #tpu.core_type<tc>, window_params = [{transform_indices = @transform_0, window_bounds = array<i64: 8, 128>}, {transform_indices = @transform_1, window_bounds = array<i64: 8, 128>}, {transform_indices = @transform_2, window_bounds = array<i64: 8, 128>}, {transform_indices = @transform_3, window_bounds = array<i64: 8, 128>}]} {
    %c0 = arith.constant 0 : index
    %c0_0 = arith.constant 0 : index
    %0 = vector.load %arg1[%c0, %c0_0] : memref<8x128xf32, #tpu.memory_space<vmem>>, vector<8x128xf32>
    %c0_1 = arith.constant 0 : index
    %c0_2 = arith.constant 0 : index
    %1 = vector.load %arg2[%c0_1, %c0_2] : memref<8x128xf32, #tpu.memory_space<vmem>>, vector<8x128xf32>
    %2 = math.exp %1 : vector<8x128xf32>
    %c0_3 = arith.constant 0 : index
    %c0_4 = arith.constant 0 : index
    %3 = vector.load %arg3[%c0_3, %c0_4] : memref<8x128xf32, #tpu.memory_space<vmem>>, vector<8x128xf32>
    %4 = arith.mulf %2, %3 : vector<8x128xf32>
    %5 = arith.addf %0, %4 : vector<8x128xf32>
    %c0_5 = arith.constant 0 : index
    %c0_6 = arith.constant 0 : index
    %6 = vector.load %arg4[%c0_5, %c0_6] : memref<8x128xf32, #tpu.memory_space<vmem>>, vector<8x128xf32>
    tpu.vector_store %arg4[%c0_5, %c0_6], %5 {strides = array<i32>} : memref<8x128xf32, #tpu.memory_space<vmem>>, vector<8x128xf32>,
    return
  }
  func.func @transform_0(%arg0: i32) -> (i32, i32) {
    %c0_i32 = arith.constant 0 : i32
    %c0_i32_0 = arith.constant 0 : i32
    return %arg0, %c0_i32 : i32, i32
  }
  func.func @transform_1(%arg0: i32) -> (i32, i32) {
    %c0_i32 = arith.constant 0 : i32
    %c0_i32_0 = arith.constant 0 : i32
    return %arg0, %c0_i32 : i32, i32
  }
  func.func @transform_2(%arg0: i32) -> (i32, i32) {
    %c0_i32 = arith.constant 0 : i32
    %c0_i32_0 = arith.constant 0 : i32
    return %arg0, %c0_i32 : i32, i32
  }
  func.func @transform_3(%arg0: i32) -> (i32, i32) {
    %c0_i32 = arith.constant 0 : i32
    %c0_i32_0 = arith.constant 0 : i32
    return %arg0, %c0_i32 : i32, i32
  }
}

</mosaic_0001>

<llo_original>
// kernel: tpu_custom_call.1
$region0: #{tpu_custom_call.1}
  #allocation0 [shape = 'u32[]', space=smem, size = 0x4, offset = 0x4, fixed_abs, tag = 'smem constant byte address 0x4 - core index']
  #allocation1 [shape = 'u32[144,128]{1,0:T(1,128)}', space=vmem, size = 0x12000, scoped, tag = 'internal scratch']
  %s0 = inlined_call_operand.hbm [shape: f32[8,128], index: 0, kind: input, shape index: {}]
  %s1 = inlined_call_operand.hbm [shape: f32[8,128], index: 1, kind: input, shape index: {}]
  %s2 = inlined_call_operand.hbm [shape: f32[8,128], index: 2, kind: input, shape index: {}]
  %s3 = inlined_call_operand.hbm [shape: f32[8,128], index: 3, kind: output, shape index: {}]
  %s4 = sld [smem:[#allocation0]]
  $region34: #{tpu_custom_call.1} parent=0
    _
  %s6 = ssub.s32 1, %s4
  %s7 = scalar_select 0, %s6, %s4
  $region1: #{tpu_custom_call.1} parent=0
    #allocation2 [shape = 'u8[4096]{0}', space=vmem, size = 0x1000, scoped, tag = 'input window, operand 0, single buffered']
    #allocation3 [shape = 's32[1]{0}', space=sflag, size = 0x4, scoped, tag = 'scoped memory for tpu_custom_call.1']
    #allocation4 [shape = 's32[1]{0}', space=sflag, size = 0x4, scoped, tag = 'scoped memory for tpu_custom_call.1']
    #allocation5 [shape = 'u8[4096]{0}', space=vmem, size = 0x1000, scoped, tag = 'input window, operand 1, single buffered']
    #allocation6 [shape = 's32[1]{0}', space=sflag, size = 0x4, scoped, tag = 'scoped memory for tpu_custom_call.1']
    #allocation7 [shape = 'u8[4096]{0}', space=vmem, size = 0x1000, scoped, tag = 'input window, operand 2, single buffered']
    #allocation8 [shape = 'u8[4096]{0}', space=vmem, size = 0x1000, scoped, tag = 'output window, operand 0, single buffered']
    %8 = vsyncpa [#allocation3], 0
    %9 = vsyncpa [#allocation6], 0
    %10 = vsyncpa [#allocation4], 0
    // Predicated region
    $region2: #{tpu_custom_call.1} parent=1 // pred_check
      _
    $region3: #{tpu_custom_call.1} parent=1 // pred_check_branch
      %12 = sbr.rel (0) target = $region5
    $region4: #{tpu_custom_call.1} parent=1 // pred_region
      %s14 = ssub.s32 128, 128
      %15 = vsyncadd [#allocation3], %s14
      %s17 = sshll.u32 [#allocation2], 4
      %s18 = int_to_ptr.vmem [resolvable:$true] %s17
      %20 = dma.hbm_to_vmem [thread:$0]  %s0, 128, %s18, [#allocation3]
    $region5: #{tpu_custom_call.1} parent=1 // pred_fallthru
      _
    // Predicated region
    $region6: #{tpu_custom_call.1} parent=1 // pred_check
      _
    $region7: #{tpu_custom_call.1} parent=1 // pred_check_branch
      %22 = sbr.rel (0) target = $region9
    $region8: #{tpu_custom_call.1} parent=1 // pred_region
      %s24 = ssub.s32 128, 128
      %25 = vsyncadd [#allocation6], %s24
      %s27 = sshll.u32 [#allocation5], 4
      %s28 = int_to_ptr.vmem [resolvable:$true] %s27
      %30 = dma.hbm_to_vmem [thread:$0]  %s1, 128, %s28, [#allocation6]
    $region9: #{tpu_custom_call.1} parent=1 // pred_fallthru
      _
    // Predicated region
    $region10: #{tpu_custom_call.1} parent=1 // pred_check
      _
    $region11: #{tpu_custom_call.1} parent=1 // pred_check_branch
      %32 = sbr.rel (0) target = $region13
    $region12: #{tpu_custom_call.1} parent=1 // pred_region
      %s34 = ssub.s32 128, 128
      %35 = vsyncadd [#allocation6], %s34
      %s37 = sshll.u32 [#allocation7], 4
      %s38 = int_to_ptr.vmem [resolvable:$true] %s37
      %40 = dma.hbm_to_vmem [thread:$0]  %s2, 128, %s38, [#allocation6]
    $region13: #{tpu_custom_call.1} parent=1 // pred_fallthru
      _
    // Predicated region
    $region14: #{tpu_custom_call.1} parent=1 // pred_check
      _
    $region15: #{tpu_custom_call.1} parent=1 // pred_check_branch
      %42 = sbr.rel (0) target = $region17
    $region16: #{tpu_custom_call.1} parent=1 // pred_region
      %43 = dma.done [#allocation3], 128
    $region17: #{tpu_custom_call.1} parent=1 // pred_fallthru
      _
    // Predicated region
    $region18: #{tpu_custom_call.1} parent=1 // pred_check
      _
    $region19: #{tpu_custom_call.1} parent=1 // pred_check_branch
      %45 = sbr.rel (0) target = $region21
    $region20: #{tpu_custom_call.1} parent=1 // pred_region
      %46 = dma.done [#allocation6], 128
    $region21: #{tpu_custom_call.1} parent=1 // pred_fallthru
      _
    // Predicated region
    $region22: #{tpu_custom_call.1} parent=1 // pred_check
      _
    $region23: #{tpu_custom_call.1} parent=1 // pred_check_branch
      %48 = sbr.rel (0) target = $region25
    $region24: #{tpu_custom_call.1} parent=1 // pred_region
      %49 = dma.done [#allocation6], 128
    $region25: #{tpu_custom_call.1} parent=1 // pred_fallthru
      _
    %v50 = vld [vmem:[#allocation2] sm:$0xff]
    %v51 = vld [vmem:[#allocation5] sm:$0xff]
    %v52 = vmul.f32 %v51, 1.442695
    %v53 = vpow.pop %v52
    %v54 = vld [vmem:[#allocation7] sm:$0xff]
    %v55 = vmul.f32 %v53, %v54
    %v56 = vadd.f32 %v50, %v55
    %57 = vst [vmem:[#allocation8] sm:$0xff] %v56
    // Predicated region
    $region26: #{tpu_custom_call.1} parent=1 // pred_check
      _
    $region27: #{tpu_custom_call.1} parent=1 // pred_check_branch
      %59 = sbr.rel (0) target = $region29
    $region28: #{tpu_custom_call.1} parent=1 // pred_region
      %s61 = ssub.s32 128, 128
      %62 = vsyncadd [#allocation4], %s61
      %s64 = sshll.u32 [#allocation8], 4
      %s65 = int_to_ptr.vmem [resolvable:$true] %s64
      %67 = dma.vmem_to_hbm [thread:$0]  %s65, 128, %s3, [#allocation4]
    $region29: #{tpu_custom_call.1} parent=1 // pred_fallthru
      _
    // Predicated region
    $region30: #{tpu_custom_call.1} parent=1 // pred_check
      _
    $region31: #{tpu_custom_call.1} parent=1 // pred_check_branch
      %69 = sbr.rel (0) target = $region33
    $region32: #{tpu_custom_call.1} parent=1 // pred_region
      %70 = dma.done [#allocation4], 128
    $region33: #{tpu_custom_call.1} parent=1 // pred_fallthru
      _
    %71 = vsyncpa [#allocation3], 1
    %72 = vsyncpa [#allocation6], 1
    %73 = vsyncpa [#allocation4], 1

</llo_original>
